<compile_context>
chip_gen: v5e
topology: v5e:2x2
jax: 0.10.0
libtpu: 0.0.40
codegen_flags: <defaults>
</compile_context>

<pallas_src>
import jax
import jax.numpy as jnp
from jax import lax
from jax.experimental import pallas as pl
from jax.experimental.pallas import tpu as pltpu

HIDDEN = (1024, 128, 64, 16, 2)
OUT = HIDDEN[-1]
OUT_PAD = 128  # lane-dense padded width of the composed weight / output block


def affine_kernel(x_ref, w_ref, b_ref, o_ref):
    # Entire eval-mode MLP as one affine map per batch tile.
    w = w_ref[...]
    x = x_ref[...].astype(w.dtype)  # in-kernel cast: no wrapper-side HBM pass
    acc = jnp.dot(x, w, preferred_element_type=jnp.float32) + b_ref[...]
    o_ref[...] = acc.astype(o_ref.dtype)


def make_params(input_size, key):
    """Deterministic init matching the PyTorch __init__:
    weights ~ Normal(0, 1/(input_size+1)), biases = 0. Weights stored (in, out)."""
    std = 1.0 / (input_size + 1)
    dims = (input_size,) + HIDDEN
    params = []
    for i in range(len(HIDDEN)):
        key, sub = jax.random.split(key)
        w = std * jax.random.normal(sub, (dims[i], dims[i + 1]), dtype=jnp.float32)
        b = jnp.zeros((1, dims[i + 1]), dtype=jnp.float32)
        params.append((w, b))
    return params


def compose_affine(params):
    """Fold Linear -> Dropout(identity) -> ... -> Linear into one affine map (f32)."""
    w, b = params[0]
    hi = lax.Precision.HIGHEST  # true-f32 composition (don't let XLA downgrade)
    for wi, bi in params[1:]:
        w = jnp.dot(w, wi, precision=hi, preferred_element_type=jnp.float32)
        b = jnp.dot(b, wi, precision=hi, preferred_element_type=jnp.float32) + bi
    return w, b  # (input_size, 2), (1, 2)


def prepare_params(params, *, use_bf16=True):
    """Compose the chain and lay it out for the kernel:
    - pad (input_size,2)/(1,2) to (input_size,OUT_PAD)/(1,OUT_PAD) so the output
      block is lane-dense (wrapper slices [:, :2] back out);
    - optionally cast the composed weight to bf16 (x is cast in-kernel; the bias
      stays f32 and is added after f32 MXU accumulation). The bf16 fast path
      carries ~bf16-level (<~1%) relative error; use use_bf16=False for exact
      f32 semantics."""
    w, b = compose_affine(params)
    wp = jnp.zeros((w.shape[0], OUT_PAD), jnp.float32).at[:, :OUT].set(w)
    bp = jnp.zeros((1, OUT_PAD), jnp.float32).at[:, :OUT].set(b)
    if use_bf16:
        wp = wp.astype(jnp.bfloat16)
    return wp, bp


def _round_up(n, m):
    return ((n + m - 1) // m) * m


def _device_kind():
    try:
        return jax.devices()[0].device_kind.lower()
    except Exception:
        return ""


def _default_tile_m(kind):
    if "v5" in kind:
        return 1024  # v5e: 1 TC, 128x128 MXU
    return 2048      # v6e / v7x: amortize ~0.35us/step; VMEM footprint ~6.5 MiB


def mlp_forward(x, prepared, *, tile_m=None, out_dtype=jnp.float32):
    """x: (B, input_size), any float dtype (cast happens inside the kernel)."""
    wp, bp = prepared
    B, D = x.shape
    assert wp.shape == (D, OUT_PAD) and bp.shape == (1, OUT_PAD)

    kind = _device_kind()
    if tile_m is None:
        tile_m = _default_tile_m(kind)
    if B <= 8:
        tile_m = B  # full-dim batch block (allowed for any B; single grid step)
    else:
        is_v7 = ("v7" in kind) or ("7x" in kind)
        if is_v7 and B >= 256:
            # v7x only (2 TensorCores): keep an even, >=2-step grid so
            # dimension_semantics=("parallel",) feeds both cores.
            tile_m = min(tile_m, _round_up((B + 1) // 2, 8))
        # largest multiple-of-8 tile that does not exceed the batch
        tile_m = max(8, min((tile_m // 8) * 8, (B // 8) * 8))

    grid_m = pl.cdiv(B, tile_m)  # ragged last block handled by Pallas (no jnp.pad)

    out_pad = pl.pallas_call(
        affine_kernel,
        out_shape=jax.ShapeDtypeStruct((B, OUT_PAD), out_dtype),
        grid_spec=pltpu.PrefetchScalarGridSpec(
            num_scalar_prefetch=0,
            grid=(grid_m,),
            in_specs=[
                pl.BlockSpec((tile_m, D), lambda i: (i, 0)),     # batch-tiled x
                pl.BlockSpec(wp.shape, lambda i: (0, 0)),        # resident weight
                pl.BlockSpec(bp.shape, lambda i: (0, 0)),        # resident bias
            ],
            out_specs=pl.BlockSpec((tile_m, OUT_PAD), lambda i: (i, 0)),
        ),
        compiler_params=pltpu.CompilerParams(
            dimension_semantics=("parallel",),
            vmem_limit_bytes=32 * 1024 * 1024,
        ),
    )(x, wp, bp)
    return out_pad[:, :OUT]


def mlp_reference(x, params):
    """Plain-JAX layer-by-layer reference, forced to true f32 matmul precision."""
    h = x.astype(jnp.float32)
    for w, b in params:
        h = jnp.dot(h, w, precision=lax.Precision.HIGHEST,
                    preferred_element_type=jnp.float32) + b
    return h


if __name__ == "__main__":
    key = jax.random.PRNGKey(0)
    k_x, k_x2, k_p = jax.random.split(key, 3)

    input_size = 256  # self.input_size
    batch = 8

    x = jax.random.normal(k_x, (batch, input_size), dtype=jnp.float32)
    params = make_params(input_size, k_p)
    ref = mlp_reference(x, params)
    scale = float(jnp.max(jnp.abs(ref)))

    # Exact f32 path (composed weight kept in f32). Tolerance of 1% of the
    # output scale covers possible MXU pass-count differences for f32 operands;
    # a real bug (wrong composition/bias/slice) would be orders of magnitude off.
    out_f32 = jax.block_until_ready(
        mlp_forward(x, prepare_params(params, use_bf16=False)))
    assert out_f32.shape == (batch, OUT), out_f32.shape
    assert float(jnp.max(jnp.abs(out_f32 - ref))) <= 1e-2 * scale, "f32 path mismatch"

    # Fast path (default): composed weight + x in bf16, f32 accumulation.
    out_bf16 = jax.block_until_ready(mlp_forward(x, prepare_params(params)))
    assert out_bf16.shape == (batch, OUT), out_bf16.shape
    w_c, b_c = compose_affine(params)
    ref_match = jnp.dot(x.astype(jnp.bfloat16), w_c.astype(jnp.bfloat16),
                        preferred_element_type=jnp.float32) + b_c
    assert float(jnp.max(jnp.abs(out_bf16 - ref_match))) <= 2e-3 * scale, \
        "bf16 path mismatch vs matching-precision reference"
    # Documented fast-path error budget: <=3% of output scale vs exact f32.
    assert float(jnp.max(jnp.abs(out_bf16 - ref))) <= 3e-2 * scale, \
        "bf16 path drifted beyond documented budget"

    # Ragged batch (not a multiple of the tile; no wrapper-side padding).
    batch2 = 13
    x2 = jax.random.normal(k_x2, (batch2, input_size), dtype=jnp.float32)
    ref2 = mlp_reference(x2, params)
    out2 = jax.block_until_ready(
        mlp_forward(x2, prepare_params(params, use_bf16=False)))
    assert out2.shape == (batch2, OUT), out2.shape
    assert float(jnp.max(jnp.abs(out2 - ref2))) <= 1e-2 * float(jnp.max(jnp.abs(ref2))), \
        "ragged-batch mismatch"

    print("KERNEL_OK")
</pallas_src>

<mosaic_0001>
module attributes {stable_mosaic.version = 11 : i64} {
  func.func @affine_kernel(%arg0: i32, %arg1: memref<8x256xf32, #tpu.memory_space<vmem>>, %arg2: memref<256x128xf32, #tpu.memory_space<vmem>>, %arg3: memref<1x128xf32, #tpu.memory_space<vmem>>, %arg4: memref<8x128xf32, #tpu.memory_space<vmem>>) attributes {dimension_semantics = [#tpu.dimension_semantics<parallel>], iteration_bounds = array<i64: 1>, scalar_prefetch = 0 : i64, scratch_operands = 0 : i64, tpu.core_type = #tpu.core_type<tc>, window_params = [{transform_indices = @transform_0, window_bounds = array<i64: 8, 256>}, {pipeline_mode = #tpu.pipeline_mode<synchronous>, transform_indices = @transform_1, window_bounds = array<i64: 256, 128>}, {pipeline_mode = #tpu.pipeline_mode<synchronous>, transform_indices = @transform_2, window_bounds = array<i64: 1, 128>}, {transform_indices = @transform_3, window_bounds = array<i64: 8, 128>}]} {
    %c0 = arith.constant 0 : index
    %c0_0 = arith.constant 0 : index
    %0 = vector.load %arg2[%c0, %c0_0] : memref<256x128xf32, #tpu.memory_space<vmem>>, vector<256x128xf32>
    %c0_1 = arith.constant 0 : index
    %c0_2 = arith.constant 0 : index
    %1 = vector.load %arg1[%c0_1, %c0_2] : memref<8x256xf32, #tpu.memory_space<vmem>>, vector<8x256xf32>
    %cst = arith.constant dense<0.000000e+00> : vector<8x128xf32>
    %2 = tpu.matmul %1, %0, %cst {dimension_numbers = #tpu.dot_dimension_numbers<[1], [0], [0], [1], [0, 0, 1, 1], [], []>} : vector<8x256xf32>, vector<256x128xf32>, vector<8x128xf32> -> vector<8x128xf32>
    %c0_3 = arith.constant 0 : index
    %c0_4 = arith.constant 0 : index
    %3 = vector.load %arg3[%c0_3, %c0_4] : memref<1x128xf32, #tpu.memory_space<vmem>>, vector<1x128xf32>
    %4 = vector.broadcast %3 : vector<1x128xf32> to vector<8x128xf32>
    %5 = arith.addf %2, %4 : vector<8x128xf32>
    %c0_5 = arith.constant 0 : index
    %c0_6 = arith.constant 0 : index
    %6 = vector.load %arg4[%c0_5, %c0_6] : memref<8x128xf32, #tpu.memory_space<vmem>>, vector<8x128xf32>
    tpu.vector_store %arg4[%c0_5, %c0_6], %5 {strides = array<i32>} : memref<8x128xf32, #tpu.memory_space<vmem>>, vector<8x128xf32>,
    return
  }
  func.func @transform_0(%arg0: i32) -> (i32, i32) {
    %c0_i32 = arith.constant 0 : i32
    %c0_i32_0 = arith.constant 0 : i32
    return %arg0, %c0_i32 : i32, i32
  }
  func.func @transform_1(%arg0: i32) -> (i32, i32) {
    %c0_i32 = arith.constant 0 : i32
    %c0_i32_0 = arith.constant 0 : i32
    %c0_i32_1 = arith.constant 0 : i32
    return %c0_i32, %c0_i32_0 : i32, i32
  }
  func.func @transform_2(%arg0: i32) -> (i32, i32) {
    %c0_i32 = arith.constant 0 : i32
    %c0_i32_0 = arith.constant 0 : i32
    %c0_i32_1 = arith.constant 0 : i32
    return %c0_i32, %c0_i32_0 : i32, i32
  }
  func.func @transform_3(%arg0: i32) -> (i32, i32) {
    %c0_i32 = arith.constant 0 : i32
    %c0_i32_0 = arith.constant 0 : i32
    return %arg0, %c0_i32 : i32, i32
  }
}

</mosaic_0001>

<llo_original>
// kernel: tpu_custom_call.1
$region0: #{tpu_custom_call.1}
  #allocation0 [shape = 'u32[]', space=smem, size = 0x4, offset = 0x4, fixed_abs, tag = 'smem constant byte address 0x4 - core index']
  #allocation1 [shape = 'u32[72,128]{1,0:T(1,128)}', space=vmem, size = 0x9000, scoped, tag = 'internal scratch']
  %s0 = inlined_call_operand.hbm [shape: f32[8,256], index: 0, kind: input, shape index: {}]
  %s1 = inlined_call_operand.hbm [shape: f32[256,128], index: 1, kind: input, shape index: {}]
  %s2 = inlined_call_operand.vmem [shape: f32[1,128], index: 2, kind: input, shape index: {}]
  %s3 = inlined_call_operand.hbm [shape: f32[8,128], index: 3, kind: output, shape index: {}]
  %s4 = sld [smem:[#allocation0]]
  $region30: #{tpu_custom_call.1} parent=0
    _
  %s6 = ssub.s32 1, %s4
  %s7 = scalar_select 0, %s6, %s4
  $region1: #{tpu_custom_call.1} parent=0
    #allocation2 [shape = 'u8[8192]{0}', space=vmem, size = 0x2000, scoped, tag = 'input window, operand 0, single buffered']
    #allocation3 [shape = 's32[1]{0}', space=sflag, size = 0x4, scoped, tag = 'scoped memory for tpu_custom_call.1']
    #allocation4 [shape = 's32[1]{0}', space=sflag, size = 0x4, scoped, tag = 'scoped memory for tpu_custom_call.1']
    #allocation5 [shape = 'u8[131072]{0}', space=vmem, size = 0x20000, scoped, tag = 'input window, operand 1, single buffered']
    #allocation6 [shape = 's32[1]{0}', space=sflag, size = 0x4, scoped, tag = 'scoped memory for tpu_custom_call.1']
    #allocation7 [shape = 'u8[4096]{0}', space=vmem, size = 0x1000, scoped, tag = 'output window, operand 0, single buffered']
    %8 = vsyncpa [#allocation3], 0
    %9 = vsyncpa [#allocation6], 0
    %10 = vsyncpa [#allocation4], 0
    // Predicated region
    $region2: #{tpu_custom_call.1} parent=1 // pred_check
      _
    $region3: #{tpu_custom_call.1} parent=1 // pred_check_branch
      %12 = sbr.rel (0) target = $region5
    $region4: #{tpu_custom_call.1} parent=1 // pred_region
      %14 = vsyncadd [#allocation3], 0
      %s16 = sshll.u32 %s0, 4
      %s17 = int_to_ptr.hbm [resolvable:$true] %s16
      %s18 = sshll.u32 [#allocation2], 4
      %s19 = int_to_ptr.vmem [resolvable:$true] %s18
      %21 = dma.hbm_to_vmem [thread:$0]  %s17, 256, %s19, [#allocation3]
    $region5: #{tpu_custom_call.1} parent=1 // pred_fallthru
      _
    // Predicated region
    $region6: #{tpu_custom_call.1} parent=1 // pred_check
      _
    $region7: #{tpu_custom_call.1} parent=1 // pred_check_branch
      %23 = sbr.rel (0) target = $region9
    $region8: #{tpu_custom_call.1} parent=1 // pred_region
      %25 = vsyncadd [#allocation6], 0
      %s26 = sshll.u32 %s1, 4
      %s27 = int_to_ptr.hbm [resolvable:$true] %s26
      %s28 = sshll.u32 [#allocation5], 4
      %s29 = int_to_ptr.vmem [resolvable:$true] %s28
      %34 = dma.hbm_to_vmem [thread:$0]  %s27, 4096, %s29, [#allocation6], 128, 128, 8
    $region9: #{tpu_custom_call.1} parent=1 // pred_fallthru
      _
    // Predicated region
    $region10: #{tpu_custom_call.1} parent=1 // pred_check
      _
    $region11: #{tpu_custom_call.1} parent=1 // pred_check_branch
      %36 = sbr.rel (0) target = $region13
    $region12: #{tpu_custom_call.1} parent=1 // pred_region
      _
    $region13: #{tpu_custom_call.1} parent=1 // pred_fallthru
      _
    // Predicated region
    $region14: #{tpu_custom_call.1} parent=1 // pred_check
      _
    $region15: #{tpu_custom_call.1} parent=1 // pred_check_branch
      %38 = sbr.rel (0) target = $region17
    $region16: #{tpu_custom_call.1} parent=1 // pred_region
      %40 = dma.done [#allocation3], 256
    $region17: #{tpu_custom_call.1} parent=1 // pred_fallthru
      _
    // Predicated region
    $region18: #{tpu_custom_call.1} parent=1 // pred_check
      _
    $region19: #{tpu_custom_call.1} parent=1 // pred_check_branch
      %42 = sbr.rel (0) target = $region21
    $region20: #{tpu_custom_call.1} parent=1 // pred_region
      %44 = dma.done [#allocation6], 4096
    $region21: #{tpu_custom_call.1} parent=1 // pred_fallthru
      _
    %v45 = vld [vmem:[#allocation5] sm:$0xff]
    %v46 = vld [vmem:[#allocation5 + $0x8] sm:$0xff]
    %v47 = vld [vmem:[#allocation5 + $0x10] sm:$0xff]
    %v48 = vld [vmem:[#allocation5 + $0x18] sm:$0xff]
    %v49 = vld [vmem:[#allocation5 + $0x20] sm:$0xff]
    %v50 = vld [vmem:[#allocation5 + $0x28] sm:$0xff]
    %v51 = vld [vmem:[#allocation5 + $0x30] sm:$0xff]
    %v52 = vld [vmem:[#allocation5 + $0x38] sm:$0xff]
    %v53 = vld [vmem:[#allocation5 + $0x40] sm:$0xff]
    %v54 = vld [vmem:[#allocation5 + $0x48] sm:$0xff]
    %v55 = vld [vmem:[#allocation5 + $0x50] sm:$0xff]
    %v56 = vld [vmem:[#allocation5 + $0x58] sm:$0xff]
    %v57 = vld [vmem:[#allocation5 + $0x60] sm:$0xff]
    %v58 = vld [vmem:[#allocation5 + $0x68] sm:$0xff]
    %v59 = vld [vmem:[#allocation5 + $0x70] sm:$0xff]
    %v60 = vld [vmem:[#allocation5 + $0x78] sm:$0xff]
    %v61 = vld [vmem:[#allocation5 + $0x80] sm:$0xff]
    %v62 = vld [vmem:[#allocation5 + $0x88] sm:$0xff]
    %v63 = vld [vmem:[#allocation5 + $0x90] sm:$0xff]
    %v64 = vld [vmem:[#allocation5 + $0x98] sm:$0xff]
    %v65 = vld [vmem:[#allocation5 + $0xa0] sm:$0xff]
    %v66 = vld [vmem:[#allocation5 + $0xa8] sm:$0xff]
    %v67 = vld [vmem:[#allocation5 + $0xb0] sm:$0xff]
    %v68 = vld [vmem:[#allocation5 + $0xb8] sm:$0xff]
    %v69 = vld [vmem:[#allocation5 + $0xc0] sm:$0xff]
    %v70 = vld [vmem:[#allocation5 + $0xc8] sm:$0xff]
    %v71 = vld [vmem:[#allocation5 + $0xd0] sm:$0xff]
    %v72 = vld [vmem:[#allocation5 + $0xd8] sm:$0xff]
    %v73 = vld [vmem:[#allocation5 + $0xe0] sm:$0xff]
    %v74 = vld [vmem:[#allocation5 + $0xe8] sm:$0xff]
    %v75 = vld [vmem:[#allocation5 + $0xf0] sm:$0xff]
    %v76 = vld [vmem:[#allocation5 + $0xf8] sm:$0xff]
    %v77 = vld [vmem:[#allocation2] sm:$0xff]
    %v78 = vld [vmem:[#allocation2 + $0x8] sm:$0xff]
    %v79 = vld [vmem:[%s2] sm:$0x1]
    %v81 = vperm.slane %v79, 0
    %83 = vmatpush.msra.mxu0 %v60
    %84 = vmatpush.msra.mxu0 %v59
    %85 = vmatpush.msra.mxu0 %v58
    %86 = vmatpush.msra.mxu0 %v57
    %87 = vmatpush.msra.mxu0 %v56
    %88 = vmatpush.msra.mxu0 %v55
    %89 = vmatpush.msra.mxu0 %v54
    %90 = vmatpush.msra.mxu0 %v53
    %91 = vmatpush.msra.mxu0 %v52
    %92 = vmatpush.msra.mxu0 %v51
    %93 = vmatpush.msra.mxu0 %v50
    %94 = vmatpush.msra.mxu0 %v49
    %95 = vmatpush.msra.mxu0 %v48
    %96 = vmatpush.msra.mxu0 %v47
    %97 = vmatpush.msra.mxu0 %v46
    %98 = vmatpush.msra.mxu0 %v45
    %99 = vmatmul.f32.gmra.mxu0 %v77
    %v100 = vpop.f32.mrf.mxu0
    %v101 = vadd.f32 %v81, %v100
    %102 = vdwg.mxu0
    %103 = vmatpush.msra.mxu0 %v76
    %104 = vmatpush.msra.mxu0 %v75
    %105 = vmatpush.msra.mxu0 %v74
    %106 = vmatpush.msra.mxu0 %v73
    %107 = vmatpush.msra.mxu0 %v72
    %108 = vmatpush.msra.mxu0 %v71
    %109 = vmatpush.msra.mxu0 %v70
    %110 = vmatpush.msra.mxu0 %v69
    %111 = vmatpush.msra.mxu0 %v68
    %112 = vmatpush.msra.mxu0 %v67
    %113 = vmatpush.msra.mxu0 %v66
    %114 = vmatpush.msra.mxu0 %v65
    %115 = vmatpush.msra.mxu0 %v64
    %116 = vmatpush.msra.mxu0 %v63
    %117 = vmatpush.msra.mxu0 %v62
    %118 = vmatpush.msra.mxu0 %v61
    %119 = vmatmul.f32.gmra.mxu0 %v78
    %v120 = vpop.f32.mrf.mxu0
    %v121 = vadd.f32 %v101, %v120
    %122 = vdwg.mxu0
    %123 = vst [vmem:[#allocation7] sm:$0xff] %v121
    // Predicated region
    $region22: #{tpu_custom_call.1} parent=1 // pred_check
      _
    $region23: #{tpu_custom_call.1} parent=1 // pred_check_branch
      %125 = sbr.rel (0) target = $region25
    $region24: #{tpu_custom_call.1} parent=1 // pred_region
      %127 = vsyncadd [#allocation4], 0
      %s129 = sshll.u32 [#allocation7], 4
      %s130 = int_to_ptr.vmem [resolvable:$true] %s129
      %s131 = sshll.u32 %s3, 4
      %s132 = int_to_ptr.hbm [resolvable:$true] %s131
      %134 = dma.vmem_to_hbm [thread:$0]  %s130, 128, %s132, [#allocation4]
    $region25: #{tpu_custom_call.1} parent=1 // pred_fallthru
      _
    // Predicated region
    $region26: #{tpu_custom_call.1} parent=1 // pred_check
      _
    $region27: #{tpu_custom_call.1} parent=1 // pred_check_branch
      %136 = sbr.rel (0) target = $region29
    $region28: #{tpu_custom_call.1} parent=1 // pred_region
      %138 = dma.done [#allocation4], 128
    $region29: #{tpu_custom_call.1} parent=1 // pred_fallthru
      _
    %139 = vsyncpa [#allocation3], 1
    %140 = vsyncpa [#allocation6], 1
    %141 = vsyncpa [#allocation4], 1

</llo_original>
